<compile_context>
chip_gen: v7x
topology: tpu7x:2x2x1
jax: 0.10.0
libtpu: 0.0.40
codegen_flags: <defaults>
</compile_context>

<pallas_src>
import functools

import jax
import jax.numpy as jnp
from jax import lax
from jax.experimental import pallas as pl
from jax.experimental.pallas import tpu as pltpu


def _ce2d_kernel(x_ref, t_ref, sum_ref, cnt_ref, *,
                 ignore_index, hw, tile, ragged):
    x = x_ref[0].astype(jnp.float32)          # (C, T): classes on sublanes
    t = t_ref[0]                              # (1, T): int32 labels

    # Numerically stable -log_softmax(x)[t] = logsumexp(x - m) - (x_t - m).
    m = jnp.max(x, axis=0, keepdims=True)                           # (1, T)
    xm = x - m                                                      # (C, T)
    lse = jnp.log(jnp.sum(jnp.exp(xm), axis=0, keepdims=True))      # (1, T)

    cls = lax.broadcasted_iota(jnp.int32, x.shape, 0)               # (C, T)
    picked = jnp.sum(jnp.where(cls == t, xm, 0.0), axis=0,
                     keepdims=True)                                  # (1, T)

    # Mask ignore_index labels; add the ragged-tail mask only if it can exist
    # (static decision -- interior-only grids pay zero extra VALU work).
    valid = t != ignore_index                                        # (1, T)
    if ragged:
        col = pl.program_id(1) * tile + lax.broadcasted_iota(
            jnp.int32, t.shape, 1)                                   # (1, T)
        valid = jnp.logical_and(valid, col < hw)

    # where-select (not multiply) so garbage in the padded tail of the last
    # block can never leak NaN/Inf into the partial sums.
    loss = jnp.where(valid, lse - picked, 0.0)                       # (1, T)

    # Per-tile scalar partials (exact in f32: count <= tile << 2^24).
    sum_ref[...] = jnp.sum(loss).reshape(1, 1, 1)
    cnt_ref[...] = jnp.sum(valid.astype(jnp.float32)).reshape(1, 1, 1)


def _round_up(v, m):
    return (v + m - 1) // m * m


def _vmem_capacity_bytes():
    # Generation-aware capacity (64 MiB on v7x, 128 MiB on v5e/v6e).
    try:
        cap = int(pltpu.get_tpu_info().vmem_capacity_bytes)
        if cap > 0:
            return cap
    except Exception:
        pass
    return 64 * 1024 * 1024  # conservative default (v7x-sized)


def _choose_tile(hw, c, itemsize, vmem_cap):
    # Working-set model per pixel (lane):
    #   * 2 double-buffered DMA blocks: logits column (C * itemsize) + i32 label
    #   * ~4 live f32 (C, tile) intermediates (x_f32, xm, exp(xm), one-hot cmp)
    # Target ~45% of physical VMEM for the working set; the scoped limit set in
    # the wrapper leaves the remaining headroom for the compiler.
    budget = int(vmem_cap * 0.45)
    bytes_per_pixel = 2 * (c * itemsize + 4) + 4 * (c * 4)
    tile = budget // max(bytes_per_pixel, 1)
    tile = max(128, min(tile, 512 * 1024))     # sanity bound only
    tile = (tile // 128) * 128
    return min(tile, _round_up(hw, 128))       # never exceed one image


def cross_entropy_2d(logits_nchw, target_nhw, *, ignore_index=-100,
                     size_average=True, tile_pixels=None):
    """Forward pass of CrossEntropy2d (dim=1, weight=None)."""
    # TODO(synk): class-balancing `weight` (module default weight=None) is not implemented.
    N, C, H, W = logits_nchw.shape
    assert target_nhw.shape == (N, H, W)
    HW = H * W

    # Free reshapes only -- no transpose, no padding copy, no dtype upcast.
    x = logits_nchw.reshape(N, C, HW)
    t = target_nhw.astype(jnp.int32).reshape(N, 1, HW)

    vmem_cap = _vmem_capacity_bytes()
    tile = tile_pixels or _choose_tile(HW, C, logits_nchw.dtype.itemsize,
                                       vmem_cap)
    num_tiles = pl.cdiv(HW, tile)
    ragged = (HW % tile) != 0
    grid = (N, num_tiles)

    kernel = functools.partial(_ce2d_kernel, ignore_index=ignore_index,
                               hw=HW, tile=tile, ragged=ragged)

    vmem_limit = int(min(vmem_cap * 0.8, 100 * 1024 * 1024))
    vmem_limit = max(vmem_limit, 32 * 1024 * 1024)

    sum_part, cnt_part = pl.pallas_call(
        kernel,
        out_shape=(jax.ShapeDtypeStruct((N * num_tiles, 1, 1), jnp.float32),
                   jax.ShapeDtypeStruct((N * num_tiles, 1, 1), jnp.float32)),
        grid_spec=pltpu.PrefetchScalarGridSpec(
            num_scalar_prefetch=0,
            grid=grid,
            in_specs=[
                pl.BlockSpec((1, C, tile), lambda n, j: (n, 0, j)),
                pl.BlockSpec((1, 1, tile), lambda n, j: (n, 0, j)),
            ],
            out_specs=[
                pl.BlockSpec((1, 1, 1), lambda n, j: (n * num_tiles + j, 0, 0)),
                pl.BlockSpec((1, 1, 1), lambda n, j: (n * num_tiles + j, 0, 0)),
            ],
        ),
        compiler_params=pltpu.CompilerParams(
            dimension_semantics=("parallel", "parallel"),
            vmem_limit_bytes=vmem_limit),
    )(x, t)

    total = jnp.sum(sum_part)
    # Per-tile counts are exact f32 integers; sum them exactly in int32.
    n_valid = jnp.sum(cnt_part.astype(jnp.int32))
    if size_average:
        # NaN if every pixel is ignore_index -- matches PyTorch's degenerate case.
        return total / n_valid.astype(jnp.float32)
    return total


def _reference(logits_nchw, target_nhw, ignore_index=-100):
    # Pure-JAX reference of F.log_softmax(dim=1) + NLLLoss2d(size_average=True).
    logp = jax.nn.log_softmax(logits_nchw.astype(jnp.float32), axis=1)
    t = target_nhw.astype(jnp.int32)
    valid = (t != ignore_index)
    t_safe = jnp.where(valid, t, 0)
    picked = jnp.take_along_axis(logp, t_safe[:, None, :, :], axis=1)[:, 0]
    loss = jnp.where(valid, -picked, 0.0)
    return jnp.sum(loss) / jnp.sum(valid.astype(jnp.float32))


if __name__ == "__main__":
    key = jax.random.PRNGKey(0)
    k1, k2 = jax.random.split(key)

    N, C, H, W = 2, 4, 16, 16
    logits = jax.random.normal(k1, (N, C, H, W), dtype=jnp.float32)
    target = jax.random.randint(k2, (N, H, W), 0, C, dtype=jnp.int32)
    # Sprinkle a few ignore_index labels to exercise masking.
    target = target.at[0, 0, :4].set(-100)

    out = cross_entropy_2d(logits, target)
    out = jax.block_until_ready(out)
    ref = _reference(logits, target)
    assert jnp.allclose(out, ref, atol=1e-5, rtol=1e-5), (out, ref)

    # Also exercise a ragged / multi-tile path via an explicit small tile.
    out2 = cross_entropy_2d(logits, target, tile_pixels=128)
    out2 = jax.block_until_ready(out2)
    assert jnp.allclose(out2, ref, atol=1e-5, rtol=1e-5), (out2, ref)

    print("KERNEL_OK")
</pallas_src>

<mosaic_0001>
module attributes {stable_mosaic.version = 11 : i64} {
  func.func @_ce2d_kernel(%arg0: i32, %arg1: i32, %arg2: memref<1x4x256xf32, #tpu.memory_space<vmem>>, %arg3: memref<1x1x256xi32, #tpu.memory_space<vmem>>, %arg4: memref<1x1x1xf32, #tpu.memory_space<vmem>>, %arg5: memref<1x1x1xf32, #tpu.memory_space<vmem>>) attributes {dimension_semantics = [#tpu.dimension_semantics<parallel>, #tpu.dimension_semantics<parallel>], iteration_bounds = array<i64: 2, 1>, scalar_prefetch = 0 : i64, scratch_operands = 0 : i64, tpu.core_type = #tpu.core_type<tc>, window_params = [{transform_indices = @transform_0, window_bounds = array<i64: 1, 4, 256>}, {transform_indices = @transform_1, window_bounds = array<i64: 1, 1, 256>}, {transform_indices = @transform_2, window_bounds = array<i64: 1, 1, 1>}, {transform_indices = @transform_3, window_bounds = array<i64: 1, 1, 1>}]} {
    %c0 = arith.constant 0 : index
    %c0_0 = arith.constant 0 : index
    %c0_1 = arith.constant 0 : index
    %0 = vector.load %arg2[%c0, %c0_0, %c0_1] : memref<1x4x256xf32, #tpu.memory_space<vmem>>, vector<1x4x256xf32>
    %1 = vector.shape_cast %0 : vector<1x4x256xf32> to vector<4x256xf32>
    %c0_2 = arith.constant 0 : index
    %c0_3 = arith.constant 0 : index
    %c0_4 = arith.constant 0 : index
    %2 = vector.load %arg3[%c0_2, %c0_3, %c0_4] : memref<1x1x256xi32, #tpu.memory_space<vmem>>, vector<1x1x256xi32>
    %3 = vector.shape_cast %2 : vector<1x1x256xi32> to vector<1x256xi32>
    %cst = arith.constant dense<0xFF800000> : vector<256xf32>
    %4 = vector.multi_reduction <maximumf>, %1, %cst [0] : vector<4x256xf32> to vector<256xf32>
    %5 = vector.shape_cast %4 : vector<256xf32> to vector<1x256xf32>
    %6 = vector.broadcast %5 : vector<1x256xf32> to vector<4x256xf32>
    %7 = arith.subf %1, %6 : vector<4x256xf32>
    %8 = math.exp %7 : vector<4x256xf32>
    %cst_5 = arith.constant dense<0.000000e+00> : vector<256xf32>
    %9 = vector.multi_reduction <add>, %8, %cst_5 [0] : vector<4x256xf32> to vector<256xf32>
    %10 = vector.shape_cast %9 : vector<256xf32> to vector<1x256xf32>
    %11 = math.log %10 : vector<1x256xf32>
    %12 = tpu.iota {dimensions = array<i32: 0>} : vector<4x256xi32>
    %13 = vector.broadcast %3 : vector<1x256xi32> to vector<4x256xi32>
    %14 = arith.cmpi eq, %12, %13 : vector<4x256xi32>
    %cst_6 = arith.constant 0.000000e+00 : f32
    %15 = vector.broadcast %cst_6 : f32 to vector<4x256xf32>
    %16 = arith.select %14, %7, %15 : vector<4x256xi1>, vector<4x256xf32>
    %cst_7 = arith.constant dense<0.000000e+00> : vector<256xf32>
    %17 = vector.multi_reduction <add>, %16, %cst_7 [0] : vector<4x256xf32> to vector<256xf32>
    %18 = vector.shape_cast %17 : vector<256xf32> to vector<1x256xf32>
    %c-100_i32 = arith.constant -100 : i32
    %19 = vector.broadcast %c-100_i32 : i32 to vector<1x256xi32>
    %20 = arith.cmpi ne, %3, %19 : vector<1x256xi32>
    %21 = arith.subf %11, %18 : vector<1x256xf32>
    %cst_8 = arith.constant 0.000000e+00 : f32
    %22 = vector.broadcast %cst_8 : f32 to vector<1x256xf32>
    %23 = arith.select %20, %21, %22 : vector<1x256xi1>, vector<1x256xf32>
    %24 = vector.shape_cast %23 : vector<1x256xf32> to vector<1x1x256xf32>
    %cst_9 = arith.constant dense<0.000000e+00> : vector<1xf32>
    %25 = vector.multi_reduction <add>, %24, %cst_9 [1, 2] : vector<1x1x256xf32> to vector<1xf32>
    %26 = vector.shape_cast %25 : vector<1xf32> to vector<1x1x1xf32>
    %27 = vector.extract %26[0, 0, 0] : f32 from vector<1x1x1xf32>
    %28 = vector.broadcast %27 : f32 to vector<1x1x1xf32>
    %c0_10 = arith.constant 0 : index
    %c0_11 = arith.constant 0 : index
    %c0_12 = arith.constant 0 : index
    %29 = vector.load %arg4[%c0_10, %c0_11, %c0_12] : memref<1x1x1xf32, #tpu.memory_space<vmem>>, vector<1x1x1xf32>
    tpu.vector_store %arg4[%c0_10, %c0_11, %c0_12], %28 {strides = array<i32>} : memref<1x1x1xf32, #tpu.memory_space<vmem>>, vector<1x1x1xf32>,
    %30 = arith.extui %20 : vector<1x256xi1> to vector<1x256xi32>
    %31 = arith.sitofp %30 : vector<1x256xi32> to vector<1x256xf32>
    %32 = vector.shape_cast %31 : vector<1x256xf32> to vector<1x1x256xf32>
    %cst_13 = arith.constant dense<0.000000e+00> : vector<1xf32>
    %33 = vector.multi_reduction <add>, %32, %cst_13 [1, 2] : vector<1x1x256xf32> to vector<1xf32>
    %34 = vector.shape_cast %33 : vector<1xf32> to vector<1x1x1xf32>
    %35 = vector.extract %34[0, 0, 0] : f32 from vector<1x1x1xf32>
    %36 = vector.broadcast %35 : f32 to vector<1x1x1xf32>
    %c0_14 = arith.constant 0 : index
    %c0_15 = arith.constant 0 : index
    %c0_16 = arith.constant 0 : index
    %37 = vector.load %arg5[%c0_14, %c0_15, %c0_16] : memref<1x1x1xf32, #tpu.memory_space<vmem>>, vector<1x1x1xf32>
    tpu.vector_store %arg5[%c0_14, %c0_15, %c0_16], %36 {strides = array<i32>} : memref<1x1x1xf32, #tpu.memory_space<vmem>>, vector<1x1x1xf32>,
    return
  }
  func.func @transform_0(%arg0: i32, %arg1: i32) -> (i32, i32, i32) {
    %c0_i32 = arith.constant 0 : i32
    %c0_i32_0 = arith.constant 0 : i32
    return %arg0, %c0_i32, %arg1 : i32, i32, i32
  }
  func.func @transform_1(%arg0: i32, %arg1: i32) -> (i32, i32, i32) {
    %c0_i32 = arith.constant 0 : i32
    %c0_i32_0 = arith.constant 0 : i32
    return %arg0, %c0_i32, %arg1 : i32, i32, i32
  }
  func.func @transform_2(%arg0: i32, %arg1: i32) -> (i32, i32, i32) {
    %c1_i32 = arith.constant 1 : i32
    %0 = arith.muli %arg0, %c1_i32 : i32
    %1 = arith.addi %0, %arg1 : i32
    %c0_i32 = arith.constant 0 : i32
    %c0_i32_0 = arith.constant 0 : i32
    %c0_i32_1 = arith.constant 0 : i32
    return %1, %c0_i32, %c0_i32_0 : i32, i32, i32
  }
  func.func @transform_3(%arg0: i32, %arg1: i32) -> (i32, i32, i32) {
    %c1_i32 = arith.constant 1 : i32
    %0 = arith.muli %arg0, %c1_i32 : i32
    %1 = arith.addi %0, %arg1 : i32
    %c0_i32 = arith.constant 0 : i32
    %c0_i32_0 = arith.constant 0 : i32
    %c0_i32_1 = arith.constant 0 : i32
    return %1, %c0_i32, %c0_i32_0 : i32, i32, i32
  }
}

</mosaic_0001>

<llo_original>
// kernel: tpu_custom_call.1
$region0: #{tpu_custom_call.1}
  #allocation0 [shape = 'u32[]', space=smem, size = 0x4, offset = 0x4, fixed_abs, tag = 'smem constant byte address 0x4 - core index']
  #allocation1 [shape = 'u32[144,128]{1,0:T(1,128)}', space=vmem, size = 0x12000, scoped, tag = 'internal scratch']
  %s0 = inlined_call_operand.hbm [shape: f32[2,4,256], index: 0, kind: input, shape index: {}]
  %s1 = inlined_call_operand.hbm [shape: s32[2,1,256], index: 1, kind: input, shape index: {}]
  %s2 = inlined_call_operand.vmem [shape: f32[2,1,1], index: 2, kind: output, shape index: {0}]
  %s3 = inlined_call_operand.vmem [shape: f32[2,1,1], index: 3, kind: output, shape index: {1}]
  %4 = xla_tuple %s2, %s3
  %s5 = sld [smem:[#allocation0]]
  $region57: #{tpu_custom_call.1} parent=0
    _
  %s7 = ssub.s32 1, %s5
  %s8 = scalar_select 0, %s7, %s5
  $region1: #{tpu_custom_call.1} parent=0
    #allocation2 [shape = 'u8[8192]{0}', space=vmem, size = 0x2000, scoped, tag = 'input window, operand 0']
    #allocation3 [shape = 's32[2]{0}', space=sflag, size = 0x8, scoped, tag = 'scoped memory for tpu_custom_call.1']
    #allocation4 [shape = 'u8[2048]{0}', space=vmem, size = 0x800, scoped, tag = 'input window, operand 1']
    #allocation5 [shape = 's32[2]{0}', space=sflag, size = 0x8, scoped, tag = 'scoped memory for tpu_custom_call.1']
    %9 = vsyncpa [#allocation3], 0
    %s10 = scalar_lea.sflag [#allocation3], 1
    %11 = vsyncpa %s10, 0
    %12 = vsyncpa [#allocation5], 0
    %s13 = scalar_lea.sflag [#allocation5], 1
    %14 = vsyncpa %s13, 0
    loop: start=0, step=1, limit=4
    $region2: #{tpu_custom_call.1} parent=1 // loop_pre_header
      _
    $region3: #{tpu_custom_call.1} parent=1 // loop_header
      %s16 = sphi 0, %s20
      %p17 = scmp.ge.s32.totalorder %s16, 4
      %s23 = sphi 0, %s35
      %s24 = sphi 0, %s31
      %s25 = sphi 0, %s23
      %s26 = sphi 0, %s24
      %s27 = sphi 0, %s25
      %s28 = sphi 0, %s26
      %s40 = sphi 0, %s42
      %s43 = sphi 0, %s40
      %s44 = sphi 0, %s43
      %s60 = sphi 0, %s44
      %s68 = sphi 0, %s70
      %s71 = sphi 0, %s68
      %s72 = sphi 0, %s71
      %s88 = sphi 0, %s72
      %s96 = sphi 0, %s98
      %s99 = sphi 0, %s96
      %s100 = sphi 0, %s99
      %s116 = sphi 0, %s100
      %s124 = sphi 0, %s126
      %s127 = sphi 0, %s124
      %s128 = sphi 0, %s127
      %s144 = sphi 0, %s128
    $region4: #{tpu_custom_call.1} parent=1 // loop_header_branch
      %19 = sbr.rel (%p17) target = $region8
    $region5: #{tpu_custom_call.1} parent=1 // loop_body
      %s21 = ssub.s32 %s16, 1
      %s22 = ssub.s32 %s16, 2
      %s29 = sadd.s32 1, %s24
      %p30 = scmp.ge.s32.totalorder %s29, 1
      %s31 = scalar_select %p30, 0, %s29
      %s32 = sadd.s32 1, %s23
      %s33 = scalar_select %p30, %s32, %s23
      %p34 = scmp.ge.s32.totalorder %s33, 2
      %s35 = scalar_select %p34, 0, %s33
      %s36 = ssub.s32 %s23, %s35
      %s37 = ssub.s32 %s24, %s31
      %s38 = sor.u32 %s36, %s37
      %p39 = scmp.eq.s32.totalorder %s38, 0
      %s41 = sadd.s32 %s40, 1
      %s42 = scalar_select %p39, %s40, %s41
      %p45 = pneg %p39
      %p46 = scmp.eq.s32.totalorder %s16, 1
      %p47 = por %p45, %p46
      %p48 = scmp.ne.s32.totalorder %s40, %s43
      %p49 = scmp.eq.s32.totalorder %s16, 0
      %p50 = por %p48, %p49
      %p51 = scmp.ne.s32.totalorder %s40, %s43
      %p52 = scmp.eq.s32.totalorder %s21, 1
      %p53 = por %p51, %p52
      %p54 = scmp.ne.s32.totalorder %s43, %s44
      %p55 = scmp.eq.s32.totalorder %s21, 0
      %p56 = por %p54, %p55
      %p57 = scmp.ne.s32.totalorder %s43, %s44
      %p58 = scmp.eq.s32.totalorder %s22, 1
      %p59 = por %p57, %p58
      %p61 = scmp.ne.s32.totalorder %s44, %s60
      %p62 = scmp.eq.s32.totalorder %s22, 0
      %p63 = por %p61, %p62
      %s64 = ssub.s32 %s23, %s35
      %s65 = ssub.s32 %s24, %s31
      %s66 = sor.u32 %s64, %s65
      %p67 = scmp.eq.s32.totalorder %s66, 0
      %s69 = sadd.s32 %s68, 1
      %s70 = scalar_select %p67, %s68, %s69
      %p73 = pneg %p67
      %p74 = scmp.eq.s32.totalorder %s16, 1
      %p75 = por %p73, %p74
      %p76 = scmp.ne.s32.totalorder %s68, %s71
      %p77 = scmp.eq.s32.totalorder %s16, 0
      %p78 = por %p76, %p77
      %p79 = scmp.ne.s32.totalorder %s68, %s71
      %p80 = scmp.eq.s32.totalorder %s21, 1
      %p81 = por %p79, %p80
      %p82 = scmp.ne.s32.totalorder %s71, %s72
      %p83 = scmp.eq.s32.totalorder %s21, 0
      %p84 = por %p82, %p83
      %p85 = scmp.ne.s32.totalorder %s71, %s72
      %p86 = scmp.eq.s32.totalorder %s22, 1
      %p87 = por %p85, %p86
      %p89 = scmp.ne.s32.totalorder %s72, %s88
      %p90 = scmp.eq.s32.totalorder %s22, 0
      %p91 = por %p89, %p90
      %s92 = sadd.s32 %s23, %s24
      %s93 = sadd.s32 %s35, %s31
      %s94 = ssub.s32 %s92, %s93
      %p95 = scmp.eq.s32.totalorder %s94, 0
      %s97 = sadd.s32 %s96, 1
      %s98 = scalar_select %p95, %s96, %s97
      %p101 = pneg %p95
      %p102 = scmp.eq.s32.totalorder %s16, 1
      %p103 = por %p101, %p102
      %p104 = scmp.ne.s32.totalorder %s96, %s99
      %p105 = scmp.eq.s32.totalorder %s16, 0
      %p106 = por %p104, %p105
      %p107 = scmp.ne.s32.totalorder %s96, %s99
      %p108 = scmp.eq.s32.totalorder %s21, 1
      %p109 = por %p107, %p108
      %p110 = scmp.ne.s32.totalorder %s99, %s100
      %p111 = scmp.eq.s32.totalorder %s21, 0
      %p112 = por %p110, %p111
      %p113 = scmp.ne.s32.totalorder %s99, %s100
      %p114 = scmp.eq.s32.totalorder %s22, 1
      %p115 = por %p113, %p114
      %p117 = scmp.ne.s32.totalorder %s100, %s116
      %p118 = scmp.eq.s32.totalorder %s22, 0
      %p119 = por %p117, %p118
      %s120 = sadd.s32 %s23, %s24
      %s121 = sadd.s32 %s35, %s31
      %s122 = ssub.s32 %s120, %s121
      %p123 = scmp.eq.s32.totalorder %s122, 0
      %s125 = sadd.s32 %s124, 1
      %s126 = scalar_select %p123, %s124, %s125
      %p129 = pneg %p123
      %p130 = scmp.eq.s32.totalorder %s16, 1
      %p131 = por %p129, %p130
      %p132 = scmp.ne.s32.totalorder %s124, %s127
      %p133 = scmp.eq.s32.totalorder %s16, 0
      %p134 = por %p132, %p133
      %p135 = scmp.ne.s32.totalorder %s124, %s127
      %p136 = scmp.eq.s32.totalorder %s21, 1
      %p137 = por %p135, %p136
      %p138 = scmp.ne.s32.totalorder %s127, %s128
      %p139 = scmp.eq.s32.totalorder %s21, 0
      %p140 = por %p138, %p139
      %p141 = scmp.ne.s32.totalorder %s127, %s128
      %p142 = scmp.eq.s32.totalorder %s22, 1
      %p143 = por %p141, %p142
      %p145 = scmp.ne.s32.totalorder %s128, %s144
      %p146 = scmp.eq.s32.totalorder %s22, 0
      %p147 = por %p145, %p146
      %p148 = scmp.le.s32.totalorder 1, %s16
      %p149 = scmp.lt.s32.totalorder %s16, 3
      %p150 = pnand %p148, %p149
      %p151 = pneg %p150
      // Predicated region
      $region9: #{tpu_custom_call.1} parent=5 // pred_check
        _
      $region10: #{tpu_custom_call.1} parent=5 // pred_check_branch
        %153 = sbr.rel (%p150) target = $region12
      $region11: #{tpu_custom_call.1} parent=5 // pred_region
        %s154 = ssub.s32 %s16, 1
      $region12: #{tpu_custom_call.1} parent=5 // pred_fallthru
        _
      %p155 = scmp.lt.s32.totalorder %s16, 2
      // Predicated region
      $region13: #{tpu_custom_call.1} parent=5 // pred_check
        %p156 = pneg %p155
      $region14: #{tpu_custom_call.1} parent=5 // pred_check_branch
        %158 = sbr.rel (%p156) target = $region16
      $region15: #{tpu_custom_call.1} parent=5 // pred_region
        // Predicated region
        $region17: #{tpu_custom_call.1} parent=15 // pred_check
          %p159 = pneg %p50
        $region18: #{tpu_custom_call.1} parent=15 // pred_check_branch
          %161 = sbr.rel (%p159) target = $region20
        $region19: #{tpu_custom_call.1} parent=15 // pred_region
          %s162 = sand.u32 %s40, 1
          %s163 = scalar_lea.sflag [#allocation3], %s162
          %s164 = sand.u32 %s40, 1
          %s165 = smul.addr %s164, 8
          %s166 = scalar_lea.vmem [#allocation2], %s165
          %s167 = smul.u32 2, %s24
          %s169 = ssub.s32 128, 128
          %170 = vsyncadd %s163, %s169
          %s171 = smul.addr %s23, 2
          %s172 = sadd.s32 %s167, %s171
          %s173 = smul.addr %s172, 64
          %s174 = scalar_lea.hbm %s0, %s173
          %s176 = sshll.u32 %s166, 4
          %s177 = int_to_ptr.vmem [resolvable:$true] %s176
          %179 = dma.hbm_to_vmem [thread:$0]  %s174, 128, %s177, %s163
        $region20: #{tpu_custom_call.1} parent=15 // pred_fallthru
          _
        // Predicated region
        $region21: #{tpu_custom_call.1} parent=15 // pred_check
          %p180 = pneg %p78
        $region22: #{tpu_custom_call.1} parent=15 // pred_check_branch
          %182 = sbr.rel (%p180) target = $region24
        $region23: #{tpu_custom_call.1} parent=15 // pred_region
          %s183 = sand.u32 %s68, 1
          %s184 = scalar_lea.sflag [#allocation5], %s183
          %s185 = sand.u32 %s68, 1
          %s186 = smul.addr %s185, 2
          %s187 = scalar_lea.vmem [#allocation4], %s186
          %s188 = smul.u32 2, %s24
          %s190 = ssub.s32 32, 32
          %191 = vsyncadd %s184, %s190
          %s192 = smul.addr %s23, 2
          %s193 = sadd.s32 %s188, %s192
          %s194 = smul.addr %s193, 16
          %s195 = scalar_lea.hbm %s1, %s194
          %s197 = sshll.u32 %s187, 4
          %s198 = int_to_ptr.vmem [resolvable:$true] %s197
          %200 = dma.hbm_to_vmem [thread:$0]  %s195, 32, %s198, %s184
        $region24: #{tpu_custom_call.1} parent=15 // pred_fallthru
          _
      $region16: #{tpu_custom_call.1} parent=5 // pred_fallthru
        _
      %p201 = scmp.le.s32.totalorder 1, %s16
      %p202 = scmp.lt.s32.totalorder %s16, 3
      %p203 = pnand %p201, %p202
      %p204 = pneg %p203
      // Predicated region
      $region25: #{tpu_custom_call.1} parent=5 // pred_check
        _
      $region26: #{tpu_custom_call.1} parent=5 // pred_check_branch
        %206 = sbr.rel (%p203) target = $region28
      $region27: #{tpu_custom_call.1} parent=5 // pred_region
        %s207 = ssub.s32 %s16, 1
        %s208 = sand.u32 %s43, 1
        %s209 = scalar_lea.sflag [#allocation3], %s208
        %s210 = sand.u32 %s43, 1
        %s211 = smul.addr %s210, 8
        %s212 = scalar_lea.vmem [#allocation2], %s211
        // Predicated region
        $region29: #{tpu_custom_call.1} parent=27 // pred_check
          %p213 = pneg %p56
        $region30: #{tpu_custom_call.1} parent=27 // pred_check_branch
          %215 = sbr.rel (%p213) target = $region32
        $region31: #{tpu_custom_call.1} parent=27 // pred_region
          %216 = dma.done %s209, 128
        $region32: #{tpu_custom_call.1} parent=27 // pred_fallthru
          _
        %s217 = sand.u32 %s71, 1
        %s218 = scalar_lea.sflag [#allocation5], %s217
        %s219 = sand.u32 %s71, 1
        %s220 = smul.addr %s219, 2
        %s221 = scalar_lea.vmem [#allocation4], %s220
        // Predicated region
        $region33: #{tpu_custom_call.1} parent=27 // pred_check
          %p222 = pneg %p84
        $region34: #{tpu_custom_call.1} parent=27 // pred_check_branch
          %224 = sbr.rel (%p222) target = $region36
        $region35: #{tpu_custom_call.1} parent=27 // pred_region
          %225 = dma.done %s218, 32
        $region36: #{tpu_custom_call.1} parent=27 // pred_fallthru
          _
        %s226 = sand.u32 %s43, 1
        %s227 = scalar_lea.sflag [#allocation3], %s226
        %s228 = sand.u32 %s43, 1
        %s229 = smul.addr %s228, 8
        %s230 = scalar_lea.vmem [#allocation2], %s229
        %p231 = pneg %p56
        %p232 = pneg %p53
        %s233 = sand.u32 %s71, 1
        %s234 = scalar_lea.sflag [#allocation5], %s233
        %s235 = sand.u32 %s71, 1
        %s236 = smul.addr %s235, 2
        %s237 = scalar_lea.vmem [#allocation4], %s236
        %p238 = pneg %p84
        %p239 = pneg %p81
        %p240 = pneg %p112
        %p241 = pneg %p109
        %s242 = sadd.s32 %s25, %s26
        %p243 = scmp.lt.s32.totalorder %s242, 1
        %s244 = scalar_select %p243, %s242, 1
        %s245 = scalar_lea.vmem %s2, %s244
        %p246 = pneg %p140
        %p247 = pneg %p137
        %s248 = sadd.s32 %s25, %s26
        %p249 = scmp.lt.s32.totalorder %s248, 1
        %s250 = scalar_select %p249, %s248, 1
        %s251 = scalar_lea.vmem %s3, %s250
        %s252 = smul.u32 2, %s26
        %s253 = smul.u32 2, %s26
        %s254 = sadd.s32 %s25, %s26
        %p255 = scmp.lt.s32.totalorder %s254, 1
        %s256 = scalar_select %p255, %s254, 1
        %s257 = scalar_lea.vmem %s2, %s256
        %s258 = sadd.s32 %s25, %s26
        %s259 = sadd.s32 %s25, %s26
        %p260 = scmp.lt.s32.totalorder %s259, 1
        %s261 = scalar_select %p260, %s259, 1
        %s262 = scalar_lea.vmem %s3, %s261
        %s263 = sadd.s32 %s25, %s26
        %v264 = vld [vmem:[%s212] sm:$0xff]
        %v265 = vld [vmem:[%s221] sm:$0x3]
        %v267 = vcombine.high %v264, %v264
        %vm269 = vcmask 1043456
        %v270 = vsel %vm269, %v264, -inf
        %v271 = vrot.slane %v270, 4
        %v272 = vmax.f32 %v270, %v271
        %v273 = vrot.slane %v272, 2
        %v274 = vmax.f32 %v272, %v273
        %v275 = vrot.slane %v274, 1
        %v276 = vmax.f32 %v274, %v275
        %v277 = vsel %vm269, %v267, -inf
        %v278 = vrot.slane %v277, 4
        %v279 = vmax.f32 %v277, %v278
        %v280 = vrot.slane %v279, 2
        %v281 = vmax.f32 %v279, %v280
        %v282 = vrot.slane %v281, 1
        %v283 = vmax.f32 %v281, %v282
        %v286 = vcombine.low %v276, %v283
        %v288 = vsub.f32 %v264, %v286
        %v289 = vmul.f32 %v288, 1.442695
        %v290 = vpow.pop %v289
        %v292 = vcombine.high %v290, %v290
        %v294 = vsel %vm269, %v290, 0.0
        %v295 = vrot.slane %v294, 4
        %v296 = vadd.f32 %v294, %v295
        %v297 = vrot.slane %v296, 2
        %v298 = vadd.f32 %v296, %v297
        %v299 = vrot.slane %v298, 1
        %v300 = vadd.f32 %v298, %v299
        %v301 = vsel %vm269, %v292, 0.0
        %v302 = vrot.slane %v301, 4
        %v303 = vadd.f32 %v301, %v302
        %v304 = vrot.slane %v303, 2
        %v305 = vadd.f32 %v303, %v304
        %v306 = vrot.slane %v305, 1
        %v307 = vadd.f32 %v305, %v306
        %v308 = vlog2.pop %v300
        %v309 = vmul.f32 %v308, 0.6931472
        %v310 = vlog2.pop %v307
        %v311 = vmul.f32 %v310, 0.6931472
        %v312 = vlaneseq
        %v313 = vshrl.u32 %v312, 7
        %v314 = vlaneseq
        %v315 = vshrl.u32 %v314, 7
        %v316 = vsub.s32 0, %v315
        %v317 = vrot.slane %v265, %v316
        %v318 = vlaneseq
        %v319 = vshrl.u32 %v318, 7
        %v320 = vsub.s32 1, %v319
        %v321 = vrot.slane %v265, %v320
        %vm322 = vcmp.eq.s32.totalorder %v313, %v317
        %vm323 = vcmp.eq.s32.totalorder %v313, %v321
        %v325 = vcombine.high %v288, %v288
        %v327 = vsel %vm322, %v288, 0.0
        %v328 = vsel %vm323, %v325, 0.0
        %v329 = vsel %vm269, %v327, 0.0
        %v330 = vrot.slane %v329, 4
        %v331 = vadd.f32 %v329, %v330
        %v332 = vrot.slane %v331, 2
        %v333 = vadd.f32 %v331, %v332
        %v334 = vrot.slane %v333, 1
        %v335 = vadd.f32 %v333, %v334
        %v336 = vsel %vm269, %v328, 0.0
        %v337 = vrot.slane %v336, 4
        %v338 = vadd.f32 %v336, %v337
        %v339 = vrot.slane %v338, 2
        %v340 = vadd.f32 %v338, %v339
        %v341 = vrot.slane %v340, 1
        %v342 = vadd.f32 %v340, %v341
        %vm343 = vcmp.ne.s32.totalorder %v265, 4294967196
        %v344 = vsub.f32 %v309, %v335
        %v345 = vsub.f32 %v311, %v342
        %v348 = vcombine.low %v344, %v345
        %v350 = vunpack.c.l.s4 1966171168
        %v351 = vunpack.c.0.s8 %v350
        %v352 = vlaneseq
        %v353 = vshrl.u32 %v352, 7
        %v354 = vsub.s32 %v351, %v353
        %v355 = vrot.slane %v348, %v354
        %v357 = vunpack.c.l.s4 1966171168
        %v358 = vunpack.c.0.s8 %v357
        %v359 = vlaneseq
        %v360 = vshrl.u32 %v359, 7
        %v361 = vsub.s32 %v358, %v360
        %v362 = vrot.slane %v355, %v361
        %v364 = vsel %vm343, %v362, 0.0
        %v366 = vlaneseq
        %v367 = vshrl.u32 %v366, 7
        %v368 = vsub.s32 0, %v367
        %v369 = vrot.slane %v364, %v368
        %v370 = vlaneseq
        %v371 = vshrl.u32 %v370, 7
        %v372 = vsub.s32 1, %v371
        %v373 = vrot.slane %v364, %v372
        %vm376 = vcmask 1040384
        %v377 = vsel %vm376, %v369, 0.0
        %v378 = vsel %vm376, %v373, 0.0
        %v379 = vadd.f32 %v377, %v378
        %380 = vadd.xlane.f32.xlu0 %v379
        %v381 = vpop.xlane.xlu0 %380
        %v382 = vrot.slane %v381, 4
        %v383 = vadd.f32 %v381, %v382
        %v384 = vrot.slane %v383, 2
        %v385 = vadd.f32 %v383, %v384
        %v386 = vrot.slane %v385, 1
        %v387 = vadd.f32 %v385, %v386
        %s388 = vtos %v387
        %v389 = vstv %s388
        %vm390 = vcmask 0
        %391 = vst.msk [vmem:[%s257] sm:$0x1] %vm390, %v389
        %v392 = vsel %vm343, 1, 0
        %v393 = vcvt.s32.f32 %v392
        %v395 = vlaneseq
        %v396 = vshrl.u32 %v395, 7
        %v397 = vsub.s32 0, %v396
        %v398 = vrot.slane %v393, %v397
        %v399 = vlaneseq
        %v400 = vshrl.u32 %v399, 7
        %v401 = vsub.s32 1, %v400
        %v402 = vrot.slane %v393, %v401
        %v405 = vsel %vm376, %v398, 0.0
        %v406 = vsel %vm376, %v402, 0.0
        %v407 = vadd.f32 %v405, %v406
        %408 = vadd.xlane.f32.xlu0 %v407
        %v409 = vpop.xlane.xlu0 %408
        %v410 = vrot.slane %v409, 4
        %v411 = vadd.f32 %v409, %v410
        %v412 = vrot.slane %v411, 2
        %v413 = vadd.f32 %v411, %v412
        %v414 = vrot.slane %v413, 1
        %v415 = vadd.f32 %v413, %v414
        %s416 = vtos %v415
        %v417 = vstv %s416
        %418 = vst.msk [vmem:[%s262] sm:$0x1] %vm390, %v417
        %s419 = sadd.s32 %s25, %s26
        %p420 = scmp.lt.s32.totalorder %s419, 1
        %s421 = scalar_select %p420, %s419, 1
        %s422 = scalar_lea.vmem %s2, %s421
        %s423 = sadd.s32 %s25, %s26
        %p424 = scmp.lt.s32.totalorder %s423, 1
        %s425 = scalar_select %p424, %s423, 1
        %s426 = scalar_lea.vmem %s3, %s425
        // Predicated region
        $region37: #{tpu_custom_call.1} parent=27 // pred_check
          %p427 = pneg %p109
        $region38: #{tpu_custom_call.1} parent=27 // pred_check_branch
          %429 = sbr.rel (%p427) target = $region40
        $region39: #{tpu_custom_call.1} parent=27 // pred_region
          %s430 = sadd.s32 %s25, %s26
        $region40: #{tpu_custom_call.1} parent=27 // pred_fallthru
          _
        // Predicated region
        $region41: #{tpu_custom_call.1} parent=27 // pred_check
          %p431 = pneg %p137
        $region42: #{tpu_custom_call.1} parent=27 // pred_check_branch
          %433 = sbr.rel (%p431) target = $region44
        $region43: #{tpu_custom_call.1} parent=27 // pred_region
          %s434 = sadd.s32 %s25, %s26
        $region44: #{tpu_custom_call.1} parent=27 // pred_fallthru
          _
      $region28: #{tpu_custom_call.1} parent=5 // pred_fallthru
        _
      %p435 = scmp.le.s32.totalorder 2, %s16
      // Predicated region
      $region45: #{tpu_custom_call.1} parent=5 // pred_check
        %p436 = pneg %p435
      $region46: #{tpu_custom_call.1} parent=5 // pred_check_branch
        %438 = sbr.rel (%p436) target = $region48
      $region47: #{tpu_custom_call.1} parent=5 // pred_region
        %s439 = ssub.s32 %s16, 2
        // Predicated region
        $region49: #{tpu_custom_call.1} parent=47 // pred_check
          %p440 = pneg %p115
        $region50: #{tpu_custom_call.1} parent=47 // pred_check_branch
          %442 = sbr.rel (%p440) target = $region52
        $region51: #{tpu_custom_call.1} parent=47 // pred_region
          %s443 = sadd.s32 %s27, %s28
          %p444 = scmp.lt.s32.totalorder %s443, 1
          %s445 = scalar_select %p444, %s443, 1
          %s446 = scalar_lea.vmem %s2, %s445
        $region52: #{tpu_custom_call.1} parent=47 // pred_fallthru
          _
        // Predicated region
        $region53: #{tpu_custom_call.1} parent=47 // pred_check
          %p447 = pneg %p143
        $region54: #{tpu_custom_call.1} parent=47 // pred_check_branch
          %449 = sbr.rel (%p447) target = $region56
        $region55: #{tpu_custom_call.1} parent=47 // pred_region
          %s450 = sadd.s32 %s27, %s28
          %p451 = scmp.lt.s32.totalorder %s450, 1
          %s452 = scalar_select %p451, %s450, 1
          %s453 = scalar_lea.vmem %s3, %s452
        $region56: #{tpu_custom_call.1} parent=47 // pred_fallthru
          _
      $region48: #{tpu_custom_call.1} parent=5 // pred_fallthru
        _
    $region6: #{tpu_custom_call.1} parent=1 // loop_footer
      %s20 = sadd.s32 1, %s16
    $region7: #{tpu_custom_call.1} parent=1 // loop_footer_branch
      %15 = sbr.rel target = $region3
    $region8: #{tpu_custom_call.1} parent=1 // loop_exit
      _
    %454 = vsyncpa [#allocation3], 1
    %s455 = scalar_lea.sflag [#allocation3], 1
    %456 = vsyncpa %s455, 1
    %457 = vsyncpa [#allocation5], 1
    %s458 = scalar_lea.sflag [#allocation5], 1
    %459 = vsyncpa %s458, 1

</llo_original>
